<compile_context>
chip_gen: v6e
topology: v6e:2x2x1
jax: 0.10.0
libtpu: 0.0.40
codegen_flags: <defaults>
</compile_context>

<pallas_src>
import functools

import jax
import jax.numpy as jnp
from jax import lax
from jax.experimental import pallas as pl
from jax.experimental.pallas import tpu as pltpu

_LANE = 128


def _round_up(x, m):
    return (x + m - 1) // m * m


def _cdiv(a, b):
    return -(-a // b)


def _vmem_cap_bytes():
    """Generation-aware VMEM cap (3/4 of physical; v7x-safe 64 MiB fallback)."""
    try:
        info = pltpu.get_tpu_info()
        phys = int(getattr(info, "vmem_capacity_bytes", 0)) or (64 << 20)
    except Exception:
        phys = 64 << 20
    return max(32 << 20, (phys * 3) // 4)


def _plan_ktiles(k, per_col_bytes, resident_bytes, cap_bytes,
                 tile_budget_bytes=16 << 20):
    """Pick (tk, tiles, k_pad): tk a multiple of 128, tiles * tk == k_pad >= k.

    Prefers plans with k_pad == k (no jnp.pad HBM copy of the features) and an
    even tile count (so the K reduction can split across both v7x TensorCores).
    """
    k128 = _round_up(k, _LANE)
    budget = max(min(tile_budget_bytes, cap_bytes - resident_bytes - (4 << 20)),
                 per_col_bytes * _LANE)
    tk_max = max(_LANE, min(8192, (budget // per_col_bytes) // _LANE * _LANE))
    min_tiles = _cdiv(k128, tk_max)
    if min_tiles == 1 and k128 >= 1024:
        min_tiles = 2        # >= 2 K steps: tile i+1 DMA hides under tile i MXU work

    # Plan A: tk divides K exactly -> no zero-pad and no extra HBM copy of f.
    if k % _LANE == 0:
        units = k // _LANE
        best = None
        for tiles in range(min_tiles, min(units, min_tiles + 8) + 1):
            if units % tiles != 0:
                continue
            tk = (units // tiles) * _LANE
            if tk < 512 and tk != k128:
                break        # tiles only get smaller (and less efficient) from here
            if best is None:
                best = (tk, tiles)
            if tiles % 2 == 0:   # even tile count -> 2-way core split on v7x
                best = (tk, tiles)
                break
        if best is not None:
            return best[0], best[1], k

    # Plan B: minimal zero-padding (at most ~128 * tiles extra columns).
    tk = _round_up(_cdiv(k128, min_tiles), _LANE)
    tiles = _cdiv(k128, tk)
    return tk, tiles, tiles * tk


# ---------------------------------------------------------------------------
# Kernel 1: gram matrix, K-streamed, accumulated in the resident f32 output.
# Grid = (splits, K tiles per split); "parallel" split axis gives one partial
# gram per TensorCore on v7x (summed in JAX afterwards).
# ---------------------------------------------------------------------------
def _gram_kernel(f_ref, g_ref, *, inv_norm):
    kk = pl.program_id(1)

    @pl.when(kk == 0)
    def _init():
        g_ref[...] = jnp.zeros_like(g_ref)

    f = f_ref[...]                                   # native dtype feeds the MXU
    # (1,1)-contraction == f @ f.T without materializing a transpose.
    g_ref[...] += lax.dot_general(
        f, f, dimension_numbers=(((1,), (1,)), ((), ())),
        preferred_element_type=jnp.float32)

    @pl.when(kk == pl.num_programs(1) - 1)
    def _fini():
        g_ref[...] = g_ref[...] * inv_norm


def _gram_pallas(f, norm):
    """G = (f @ f.T) / norm as one K-tiled Pallas kernel; f32 (n, n) output."""
    n, k = f.shape
    dsize = f.dtype.itemsize
    cap = _vmem_cap_bytes()
    out_resident = 2 * n * n * 4                     # double-buffered f32 partial
    # TODO(synk): tile the (n, n) output over rows when 2*n^2*4 alone approaches
    # v7x's 64 MiB VMEM (n >~ 2.5k); not needed at typical style-layer widths.
    tk, tiles, k_pad = _plan_ktiles(k, per_col_bytes=2 * n * dsize,
                                    resident_bytes=out_resident, cap_bytes=cap)
    if k_pad != k:                                   # zero columns don't change f @ f.T
        f = jnp.pad(f, ((0, 0), (0, k_pad - k)))
    splits = 2 if (tiles >= 2 and tiles % 2 == 0) else 1
    kps = tiles // splits

    kernel = functools.partial(_gram_kernel, inv_norm=1.0 / float(norm))
    vmem_limit = int(min(cap, 2 * n * tk * dsize + out_resident + (4 << 20)))
    partials = pl.pallas_call(
        kernel,
        out_shape=jax.ShapeDtypeStruct((splits, n, n), jnp.float32),
        grid_spec=pltpu.PrefetchScalarGridSpec(
            num_scalar_prefetch=0,
            grid=(splits, kps),
            in_specs=[pl.BlockSpec((n, tk), lambda s, kk: (0, s * kps + kk))],
            out_specs=pl.BlockSpec((None, n, n), lambda s, kk: (s, 0, 0)),
        ),
        compiler_params=pltpu.CompilerParams(
            dimension_semantics=("parallel", "arbitrary"),
            vmem_limit_bytes=vmem_limit),
        cost_estimate=pl.CostEstimate(
            flops=2 * n * n * k_pad,
            transcendentals=0,
            bytes_accessed=n * k_pad * dsize + splits * n * n * 4),
    )(f)
    return partials.sum(axis=0)


# ---------------------------------------------------------------------------
# Kernel 2: backward — grad_f[:, tile] = D @ f[:, tile], D resident, K parallel.
# ---------------------------------------------------------------------------
def _gram_grad_kernel(d_ref, f_ref, o_ref):
    o_ref[...] = jnp.dot(d_ref[...], f_ref[...],
                         preferred_element_type=jnp.float32).astype(o_ref.dtype)


def _gram_grad_pallas(d, f):
    n, k = f.shape
    dsize = f.dtype.itemsize
    cap = _vmem_cap_bytes()
    d_resident = 2 * n * n * d.dtype.itemsize        # D block (constant index map)
    # per column of K: in + out (n, tk) tiles, double-buffered each.
    tk, tiles, k_pad = _plan_ktiles(k, per_col_bytes=4 * n * dsize,
                                    resident_bytes=d_resident, cap_bytes=cap)
    if k_pad != k:
        f = jnp.pad(f, ((0, 0), (0, k_pad - k)))
    vmem_limit = int(min(cap, 4 * n * tk * dsize + d_resident + (4 << 20)))
    out = pl.pallas_call(
        _gram_grad_kernel,
        out_shape=jax.ShapeDtypeStruct((n, k_pad), f.dtype),
        grid_spec=pltpu.PrefetchScalarGridSpec(
            num_scalar_prefetch=0,
            grid=(tiles,),
            in_specs=[
                pl.BlockSpec((n, n), lambda kk: (0, 0)),     # D stays resident
                pl.BlockSpec((n, tk), lambda kk: (0, kk)),   # f tiles stream
            ],
            out_specs=pl.BlockSpec((n, tk), lambda kk: (0, kk)),
        ),
        compiler_params=pltpu.CompilerParams(
            dimension_semantics=("parallel",),
            vmem_limit_bytes=vmem_limit),
        cost_estimate=pl.CostEstimate(
            flops=2 * n * n * k_pad,
            transcendentals=0,
            bytes_accessed=2 * n * k_pad * dsize + n * n * d.dtype.itemsize),
    )(d, f)
    return out[:, :k] if k_pad != k else out


# ---------------------------------------------------------------------------
# Differentiable gram (custom VJP through the Pallas kernels).
# ---------------------------------------------------------------------------
@functools.partial(jax.custom_vjp, nondiff_argnums=(1,))
def _gram_features(f, norm):
    return _gram_pallas(f, norm)


def _gram_features_fwd(f, norm):
    return _gram_pallas(f, norm), f


def _gram_features_bwd(norm, f, g_bar):
    # G = f f^T / norm  =>  df = (Gbar + Gbar^T) @ f / norm.
    # Cast D to the feature dtype so bf16 features run the MXU at full bf16 rate.
    d = ((g_bar + g_bar.T) * (1.0 / float(norm))).astype(f.dtype)
    return (_gram_grad_pallas(d, f),)


_gram_features.defvjp(_gram_features_fwd, _gram_features_bwd)


def gram(x, norm=None):
    """Pallas gram of an NCHW feature map: reshape(b*c, h*w) f f^T / (b*c*h*w)."""
    b, c, h, w = x.shape
    if norm is None:
        norm = b * c * h * w
    return _gram_features(x.reshape(b * c, h * w), int(norm))


def style_loss(target_gram, x):
    """MSE(target_gram, gram(x)).  The tiny (n,n) MSE epilogue stays in plain
    JAX (it fuses and reads G_x / G_t once); the kernel VMEM goes to K tiles."""
    return jnp.mean((target_gram - gram(x)) ** 2)


class StyleLoss:
    """Pallas/JAX equivalent of the PyTorch StyleLoss module.

    __call__(x) recomputes `self.loss` (MSE between the target gram and
    gram(x)) and returns x unchanged, matching torch forward semantics.  The
    target gram is computed once in __init__ (the target is a detached
    constant).  For jit/grad, prefer the functional `style_loss(...)` —
    stashing `self.loss` on the object is eager-mode convenience only.
    """

    def __init__(self, target):
        self.target = lax.stop_gradient(target)
        self.target_gram = gram(self.target)          # one-time Pallas gram
        self.loss = jnp.float32(0.0)

    def __call__(self, x):
        self.loss = style_loss(self.target_gram, x)
        return x                                      # same as torch forward


# ---------------------------------------------------------------------------
# Self-test
# ---------------------------------------------------------------------------
def _gram_ref(t):
    b, c, h, w = t.shape
    fr = t.reshape(b * c, h * w).astype(jnp.float32)
    return (fr @ fr.T) / (b * c * h * w)


def _check(shape, k_t, k_x):
    target = jax.random.normal(k_t, shape, dtype=jnp.float32)
    x = jax.random.normal(k_x, shape, dtype=jnp.float32)

    module = StyleLoss(target)
    out = jax.block_until_ready(module(x))
    loss = jax.block_until_ready(module.loss)

    ref_loss = jnp.mean((_gram_ref(target) - _gram_ref(x)) ** 2)
    assert out.shape == x.shape
    assert jnp.allclose(out, x)
    assert jnp.allclose(loss, ref_loss, rtol=1e-5, atol=1e-6), (loss, ref_loss)

    # backward: Pallas custom_vjp vs jax.grad of the plain-JAX reference
    g_tgt = module.target_gram
    g_pallas = jax.block_until_ready(
        jax.grad(lambda img: style_loss(g_tgt, img))(x))
    g_ref = jax.grad(
        lambda img: jnp.mean((_gram_ref(target) - _gram_ref(img)) ** 2))(x)
    assert g_pallas.shape == x.shape
    assert jnp.allclose(g_pallas, g_ref, rtol=1e-4, atol=1e-6), (
        float(jnp.max(jnp.abs(g_pallas - g_ref))))


if __name__ == "__main__":
    key = jax.random.PRNGKey(0)
    k0, k1, k2, k3 = jax.random.split(key, 4)

    # n = 8, K = 256: single exact K tile, no padding, single split.
    _check((2, 4, 16, 16), k0, k1)
    # n = 8, K = 1089: 2 K tiles, minimal zero-pad tail, 2-way core split.
    _check((1, 8, 33, 33), k2, k3)

    print("KERNEL_OK")
</pallas_src>

<mosaic_0001>
module attributes {stable_mosaic.version = 11 : i64} {
  func.func @_gram_kernel(%arg0: i32, %arg1: i32, %arg2: memref<8x256xf32, #tpu.memory_space<vmem>>, %arg3: memref<1x8x8xf32, #tpu.memory_space<vmem>>) attributes {dimension_semantics = [#tpu.dimension_semantics<parallel>, #tpu.dimension_semantics<arbitrary>], iteration_bounds = array<i64: 1, 1>, scalar_prefetch = 0 : i64, scratch_operands = 0 : i64, tpu.core_type = #tpu.core_type<tc>, window_params = [{transform_indices = @transform_0, window_bounds = array<i64: 8, 256>}, {transform_indices = @transform_1, window_bounds = array<i64: 1, 8, 8>}]} {
    %c0_i32 = arith.constant 0 : i32
    %0 = arith.cmpi eq, %arg1, %c0_i32 : i32
    %1 = arith.extui %0 : i1 to i32
    %c0_i32_0 = arith.constant 0 : i32
    %2 = arith.cmpi ne, %1, %c0_i32_0 : i32
    scf.if %2 {
      %cst_10 = arith.constant 0.000000e+00 : f32
      %14 = vector.broadcast %cst_10 : f32 to vector<8x8xf32>
      %c0_11 = arith.constant 0 : index
      %c0_12 = arith.constant 0 : index
      %c0_13 = arith.constant 0 : index
      %15 = vector.load %arg3[%c0_11, %c0_12, %c0_13] : memref<1x8x8xf32, #tpu.memory_space<vmem>>, vector<1x8x8xf32>
      %16 = vector.shape_cast %15 : vector<1x8x8xf32> to vector<8x8xf32>
      %17 = vector.shape_cast %14 : vector<8x8xf32> to vector<1x8x8xf32>
      tpu.vector_store %arg3[%c0_11, %c0_12, %c0_13], %17 {strides = array<i32>} : memref<1x8x8xf32, #tpu.memory_space<vmem>>, vector<1x8x8xf32>,
    } else {
    }
    %c0 = arith.constant 0 : index
    %c0_1 = arith.constant 0 : index
    %3 = vector.load %arg2[%c0, %c0_1] : memref<8x256xf32, #tpu.memory_space<vmem>>, vector<8x256xf32>
    %c0_2 = arith.constant 0 : index
    %c0_3 = arith.constant 0 : index
    %c0_4 = arith.constant 0 : index
    %4 = vector.load %arg3[%c0_2, %c0_3, %c0_4] : memref<1x8x8xf32, #tpu.memory_space<vmem>>, vector<1x8x8xf32>
    %5 = vector.shape_cast %4 : vector<1x8x8xf32> to vector<8x8xf32>
    %cst = arith.constant dense<0.000000e+00> : vector<8x8xf32>
    %6 = tpu.matmul %3, %3, %cst {dimension_numbers = #tpu.dot_dimension_numbers<[1], [1], [0], [0], [0, 0, 1, 0], [], []>} : vector<8x256xf32>, vector<8x256xf32>, vector<8x8xf32> -> vector<8x8xf32>
    %7 = arith.addf %5, %6 : vector<8x8xf32>
    %c0_5 = arith.constant 0 : index
    %c0_6 = arith.constant 0 : index
    %c0_7 = arith.constant 0 : index
    %8 = vector.load %arg3[%c0_5, %c0_6, %c0_7] : memref<1x8x8xf32, #tpu.memory_space<vmem>>, vector<1x8x8xf32>
    %9 = vector.shape_cast %8 : vector<1x8x8xf32> to vector<8x8xf32>
    %10 = vector.shape_cast %7 : vector<8x8xf32> to vector<1x8x8xf32>
    tpu.vector_store %arg3[%c0_5, %c0_6, %c0_7], %10 {strides = array<i32>} : memref<1x8x8xf32, #tpu.memory_space<vmem>>, vector<1x8x8xf32>,
    %c0_i32_8 = arith.constant 0 : i32
    %11 = arith.cmpi eq, %arg1, %c0_i32_8 : i32
    %12 = arith.extui %11 : i1 to i32
    %c0_i32_9 = arith.constant 0 : i32
    %13 = arith.cmpi ne, %12, %c0_i32_9 : i32
    scf.if %13 {
      %c0_10 = arith.constant 0 : index
      %c0_11 = arith.constant 0 : index
      %c0_12 = arith.constant 0 : index
      %14 = vector.load %arg3[%c0_10, %c0_11, %c0_12] : memref<1x8x8xf32, #tpu.memory_space<vmem>>, vector<1x8x8xf32>
      %15 = vector.shape_cast %14 : vector<1x8x8xf32> to vector<8x8xf32>
      %cst_13 = arith.constant 4.8828125E-4 : f32
      %16 = vector.broadcast %cst_13 : f32 to vector<8x8xf32>
      %17 = arith.mulf %15, %16 : vector<8x8xf32>
      %c0_14 = arith.constant 0 : index
      %c0_15 = arith.constant 0 : index
      %c0_16 = arith.constant 0 : index
      %18 = vector.load %arg3[%c0_14, %c0_15, %c0_16] : memref<1x8x8xf32, #tpu.memory_space<vmem>>, vector<1x8x8xf32>
      %19 = vector.shape_cast %18 : vector<1x8x8xf32> to vector<8x8xf32>
      %20 = vector.shape_cast %17 : vector<8x8xf32> to vector<1x8x8xf32>
      tpu.vector_store %arg3[%c0_14, %c0_15, %c0_16], %20 {strides = array<i32>} : memref<1x8x8xf32, #tpu.memory_space<vmem>>, vector<1x8x8xf32>,
    } else {
    }
    return
  }
  func.func @transform_0(%arg0: i32, %arg1: i32) -> (i32, i32) {
    %c1_i32 = arith.constant 1 : i32
    %0 = arith.muli %arg0, %c1_i32 : i32
    %1 = arith.addi %0, %arg1 : i32
    %c0_i32 = arith.constant 0 : i32
    %c0_i32_0 = arith.constant 0 : i32
    return %c0_i32, %1 : i32, i32
  }
  func.func @transform_1(%arg0: i32, %arg1: i32) -> (i32, i32, i32) {
    %c0_i32 = arith.constant 0 : i32
    %c0_i32_0 = arith.constant 0 : i32
    %c0_i32_1 = arith.constant 0 : i32
    return %arg0, %c0_i32, %c0_i32_0 : i32, i32, i32
  }
}

</mosaic_0001>

<llo_original>
// kernel: tpu_custom_call.1
$region0: #{tpu_custom_call.1}
  #allocation0 [shape = 'u32[]', space=smem, size = 0x4, offset = 0x4, fixed_abs, tag = 'smem constant byte address 0x4 - core index']
  #allocation1 [shape = 'u32[144,128]{1,0:T(1,128)}', space=vmem, size = 0x12000, scoped, tag = 'internal scratch']
  %s0 = inlined_call_operand.hbm [shape: f32[8,256], index: 0, kind: input, shape index: {}]
  %s1 = inlined_call_operand.hbm [shape: f32[1,8,8], index: 1, kind: output, shape index: {}]
  %s2 = sld [smem:[#allocation0]]
  $region26: #{tpu_custom_call.1} parent=0
    _
  %s4 = ssub.s32 1, %s2
  %s5 = scalar_select 0, %s4, %s2
  $region1: #{tpu_custom_call.1} parent=0
    #allocation2 [shape = 'u8[8192]{0}', space=vmem, size = 0x2000, scoped, tag = 'input window, operand 0, single buffered']
    #allocation3 [shape = 's32[1]{0}', space=sflag, size = 0x4, scoped, tag = 'scoped memory for tpu_custom_call.1']
    #allocation4 [shape = 's32[1]{0}', space=sflag, size = 0x4, scoped, tag = 'scoped memory for tpu_custom_call.1']
    #allocation5 [shape = 'u8[4096]{0}', space=vmem, size = 0x1000, scoped, tag = 'output window, operand 0, single buffered']
    %6 = vsyncpa [#allocation3], 0
    %7 = vsyncpa [#allocation4], 0
    // Predicated region
    $region2: #{tpu_custom_call.1} parent=1 // pred_check
      _
    $region3: #{tpu_custom_call.1} parent=1 // pred_check_branch
      %9 = sbr.rel (0) target = $region5
    $region4: #{tpu_custom_call.1} parent=1 // pred_region
      %s10 = sadd.s32 0, 0
      %s11 = smul.u32 2, %s10
      %s13 = ssub.s32 256, 256
      %14 = vsyncadd [#allocation3], %s13
      %s15 = smul.addr %s11, 128
      %s16 = scalar_lea.hbm %s0, %s15
      %s18 = sshll.u32 [#allocation2], 4
      %s19 = int_to_ptr.vmem [resolvable:$true] %s18
      %21 = dma.hbm_to_vmem [thread:$0]  %s16, 256, %s19, [#allocation3]
    $region5: #{tpu_custom_call.1} parent=1 // pred_fallthru
      _
    // Predicated region
    $region6: #{tpu_custom_call.1} parent=1 // pred_check
      _
    $region7: #{tpu_custom_call.1} parent=1 // pred_check_branch
      %23 = sbr.rel (0) target = $region9
    $region8: #{tpu_custom_call.1} parent=1 // pred_region
      %24 = dma.done [#allocation3], 256
    $region9: #{tpu_custom_call.1} parent=1 // pred_fallthru
      _
    %s25 = sadd.s32 0, 0
    %s26 = smul.u32 2, %s25
    %p27 = scmp.eq.s32.totalorder 0, 0
    // Predicated region
    $region10: #{tpu_custom_call.1} parent=1 // pred_check
      %p28 = pneg %p27
    $region11: #{tpu_custom_call.1} parent=1 // pred_check_branch
      %30 = sbr.rel (%p28) target = $region13
    $region12: #{tpu_custom_call.1} parent=1 // pred_region
      %vm31 = vcmask 64512
      %32 = vst.msk [vmem:[#allocation5] sm:$0xff] %vm31, 0.0
    $region13: #{tpu_custom_call.1} parent=1 // pred_fallthru
      _
    %v33 = vld [vmem:[#allocation2] sm:$0xff]
    %v34 = vld [vmem:[#allocation2 + $0x8] sm:$0xff]
    %v35 = vld [vmem:[#allocation5] sm:$0xff]
    %36 = vmatprep.subr.mxu0 0.0
    %37 = vmatpush1.xpose.msra.mxu0 0.0
    %38 = vmatprep.subr.mxu0 0.0
    %39 = vmatpush1.xpose.msra.mxu0 0.0
    %40 = vmatprep.subr.mxu0 0.0
    %41 = vmatpush1.xpose.msra.mxu0 0.0
    %42 = vmatprep.subr.mxu0 0.0
    %43 = vmatpush1.xpose.msra.mxu0 0.0
    %44 = vmatprep.subr.mxu0 0.0
    %45 = vmatpush1.xpose.msra.mxu0 0.0
    %46 = vmatprep.subr.mxu0 0.0
    %47 = vmatpush1.xpose.msra.mxu0 0.0
    %48 = vmatprep.subr.mxu0 0.0
    %49 = vmatpush1.xpose.msra.mxu0 0.0
    %50 = vmatprep.subr.mxu0 0.0
    %51 = vmatpush1.xpose.msra.mxu0 0.0
    %52 = vmatprep.subr.mxu0 0.0
    %53 = vmatpush1.xpose.msra.mxu0 0.0
    %54 = vmatprep.subr.mxu0 0.0
    %55 = vmatpush1.xpose.msra.mxu0 0.0
    %56 = vmatprep.subr.mxu0 0.0
    %57 = vmatpush1.xpose.msra.mxu0 0.0
    %58 = vmatprep.subr.mxu0 0.0
    %59 = vmatpush1.xpose.msra.mxu0 0.0
    %60 = vmatprep.subr.mxu0 0.0
    %61 = vmatpush1.xpose.msra.mxu0 0.0
    %62 = vmatprep.subr.mxu0 0.0
    %63 = vmatpush1.xpose.msra.mxu0 0.0
    %64 = vmatprep.subr.mxu0 0.0
    %65 = vmatpush1.xpose.msra.mxu0 0.0
    %66 = vmatprep.subr.mxu0 %v34
    %67 = vmatpush1.xpose.msra.mxu0 %v33
    %68 = vmatprep.subr.mxu0 0.0
    %69 = vmatpush2.xpose.msra.mxu0 0.0
    %70 = vmatprep.subr.mxu0 0.0
    %71 = vmatpush2.xpose.msra.mxu0 0.0
    %72 = vmatprep.subr.mxu0 0.0
    %73 = vmatpush2.xpose.msra.mxu0 0.0
    %74 = vmatprep.subr.mxu0 0.0
    %75 = vmatpush2.xpose.msra.mxu0 0.0
    %76 = vmatprep.subr.mxu0 0.0
    %77 = vmatpush2.xpose.msra.mxu0 0.0
    %78 = vmatprep.subr.mxu0 0.0
    %79 = vmatpush2.xpose.msra.mxu0 0.0
    %80 = vmatprep.subr.mxu0 0.0
    %81 = vmatpush2.xpose.msra.mxu0 0.0
    %82 = vmatprep.subr.mxu0 0.0
    %83 = vmatpush2.xpose.msra.mxu0 0.0
    %84 = vmatprep.subr.mxu0 0.0
    %85 = vmatpush2.xpose.msra.mxu0 0.0
    %86 = vmatprep.subr.mxu0 0.0
    %87 = vmatpush2.xpose.msra.mxu0 0.0
    %88 = vmatprep.subr.mxu0 0.0
    %89 = vmatpush2.xpose.msra.mxu0 0.0
    %90 = vmatprep.subr.mxu0 0.0
    %91 = vmatpush2.xpose.msra.mxu0 0.0
    %92 = vmatprep.subr.mxu0 0.0
    %93 = vmatpush2.xpose.msra.mxu0 0.0
    %94 = vmatprep.subr.mxu0 0.0
    %95 = vmatpush2.xpose.msra.mxu0 0.0
    %96 = vmatprep.subr.mxu0 0.0
    %97 = vmatpush2.xpose.msra.mxu0 0.0
    %98 = vmatprep.subr.mxu0 0.0
    %99 = vmatpush2.xpose.msra.mxu0 0.0
    %100 = vmatprep.mubr.f32.mxu0 %v34
    %101 = vmatmul.mubr.f32.gmra.mxu0 %v33
    %v102 = vpop.f32.mrf.mxu0
    %v103 = vadd.f32 0.0, %v102
    %v104 = vpop.f32.mrf.mxu0
    %105 = vdwg.mxu0
    %v106 = vadd.f32 %v35, %v103
    %vm107 = vcmask 64512
    %108 = vst.msk [vmem:[#allocation5] sm:$0xff] %vm107, %v106
    // Predicated region
    $region14: #{tpu_custom_call.1} parent=1 // pred_check
      %p109 = pneg %p27
    $region15: #{tpu_custom_call.1} parent=1 // pred_check_branch
      %111 = sbr.rel (%p109) target = $region17
    $region16: #{tpu_custom_call.1} parent=1 // pred_region
      %v112 = vld [vmem:[#allocation5] sm:$0xff]
      %v113 = vmul.f32 %v112, 0.00048828125
      %114 = vst.msk [vmem:[#allocation5] sm:$0xff] %vm107, %v113
    $region17: #{tpu_custom_call.1} parent=1 // pred_fallthru
      _
    // Predicated region
    $region18: #{tpu_custom_call.1} parent=1 // pred_check
      _
    $region19: #{tpu_custom_call.1} parent=1 // pred_check_branch
      %116 = sbr.rel (0) target = $region21
    $region20: #{tpu_custom_call.1} parent=1 // pred_region
      %s118 = ssub.s32 128, 128
      %119 = vsyncadd [#allocation4], %s118
      %s121 = sshll.u32 [#allocation5], 4
      %s122 = int_to_ptr.vmem [resolvable:$true] %s121
      %124 = dma.vmem_to_hbm [thread:$0]  %s122, 128, %s1, [#allocation4]
    $region21: #{tpu_custom_call.1} parent=1 // pred_fallthru
      _
    // Predicated region
    $region22: #{tpu_custom_call.1} parent=1 // pred_check
      _
    $region23: #{tpu_custom_call.1} parent=1 // pred_check_branch
      %126 = sbr.rel (0) target = $region25
    $region24: #{tpu_custom_call.1} parent=1 // pred_region
      %127 = dma.done [#allocation4], 128
    $region25: #{tpu_custom_call.1} parent=1 // pred_fallthru
      _
    %128 = vsyncpa [#allocation3], 1
    %129 = vsyncpa [#allocation4], 1

</llo_original>
